<compile_context>
chip_gen: v6e
topology: v6e:2x2x1
jax: 0.10.0
libtpu: 0.0.40
codegen_flags: <defaults>
</compile_context>

<pallas_src>
from datetime import datetime, timedelta
import math

import jax
import jax.numpy as jnp
from jax.experimental import pallas as pl
from jax.experimental.pallas import tpu as pltpu

_LANE = 128  # minimum lane-dense width; full-vreg unmasked stores


# ----------------------------------------------------------------------------
# Kernel
# ----------------------------------------------------------------------------
def _temporal_weight_kernel(neg_decay_ref, edge_ref, days_ref, out_ref):
    # neg_decay_ref: SMEM scalar-prefetch, shape (1,) f32, holds -decay_factor.
    # out = edge * exp(-decay * days)
    # exp lands in the EUP slot, multiplies in the VPU slot; both are fully
    # hidden under the HBM DMA for this mem-bound kernel.
    neg_decay = neg_decay_ref[0]
    days = days_ref[...].astype(jnp.float32)   # upcast (int16/int32/bf16 OK)
    edge = edge_ref[...].astype(jnp.float32)   # f32 math: safe on v5e as well
    out_ref[...] = (edge * jnp.exp(neg_decay * days)).astype(out_ref.dtype)


# ----------------------------------------------------------------------------
# Wrapper
# ----------------------------------------------------------------------------
def temporal_weighting(edge_weights: jax.Array,
                       time_diff_days: jax.Array,
                       decay_factor: float = 0.1,
                       *,
                       max_block_rows: int = 8192) -> jax.Array:
    """edge_weights: float32/bfloat16, any shape (flattened internally).
    time_diff_days: same shape; float32 (or int16/int32/bf16) day deltas.
    Returns weighted edges with edge_weights' shape and dtype."""
    assert edge_weights.shape == time_diff_days.shape
    orig_shape = edge_weights.shape
    out_dtype = edge_weights.dtype

    edge_flat = edge_weights.reshape(-1)
    days_flat = time_diff_days.reshape(-1)      # keep native dtype (NOT edge dtype)
    n = edge_flat.shape[0]

    rows = pl.cdiv(n, _LANE)
    pad = rows * _LANE - n
    if pad:
        # Only the lane remainder (< 128 elements) is padded.
        # TODO(synk): callers that control the edge-list length should pass a
        # multiple of 128 so this pad (and the trailing slice) is a no-op.
        edge_flat = jnp.pad(edge_flat, (0, pad))
        days_flat = jnp.pad(days_flat, (0, pad))
    edge2d = edge_flat.reshape(rows, _LANE)
    days2d = days_flat.reshape(rows, _LANE)

    # Tile: full extent if it fits one block, else a multiple-of-8 row tile and
    # let Pallas mask the ragged boundary block (no padded copies).
    max_block_rows = max(8, (max_block_rows // 8) * 8)
    block_rows = rows if rows <= max_block_rows else max_block_rows
    grid = (pl.cdiv(rows, block_rows),)

    # Scalar-prefetch: -decay_factor lives in SMEM, no recompile per value.
    neg_decay = jnp.asarray([-float(decay_factor)], dtype=jnp.float32)

    elems = rows * _LANE
    cost = pl.CostEstimate(
        flops=2 * elems,
        transcendentals=elems,
        bytes_accessed=elems * (2 * edge2d.dtype.itemsize + days2d.dtype.itemsize),
    )

    out2d = pl.pallas_call(
        _temporal_weight_kernel,
        out_shape=jax.ShapeDtypeStruct((rows, _LANE), out_dtype),
        grid_spec=pltpu.PrefetchScalarGridSpec(
            num_scalar_prefetch=1,
            grid=grid,
            in_specs=[
                pl.BlockSpec((block_rows, _LANE), lambda i, nd: (i, 0)),
                pl.BlockSpec((block_rows, _LANE), lambda i, nd: (i, 0)),
            ],
            out_specs=pl.BlockSpec((block_rows, _LANE), lambda i, nd: (i, 0)),
        ),
        compiler_params=pltpu.CompilerParams(
            # v7x megacore sharding; harmless on single-TC v5e/v6e.
            dimension_semantics=("parallel",),
            # 3 arrays x 2 buffers x 4 MiB = 24 MiB; leave headroom everywhere.
            vmem_limit_bytes=48 * 1024 * 1024,
        ),
        cost_estimate=cost,
    )(neg_decay, edge2d, days2d)

    if pad:
        return out2d.reshape(-1)[:n].reshape(orig_shape)
    return out2d.reshape(orig_shape)


# ----------------------------------------------------------------------------
# Host-side glue mirroring TemporalWeighting.calculate_time_weight's parsing.
# ----------------------------------------------------------------------------
def _timestamps_to_day_deltas(timestamps, now_ref, decay_factor):
    # TODO(synk): datetime.now() replaced by a fixed reference date for determinism.
    # NOTE: (now - t).days truncates to whole days, exactly like the PyTorch module.
    fallback_days = math.log(2.0) / decay_factor   # -> weight exactly 0.5 (module fallback)
    days = []
    for ts in timestamps:
        try:
            t = datetime.fromisoformat(ts) if isinstance(ts, str) else ts
            days.append(float((now_ref - t).days))
        except Exception:
            days.append(fallback_days)
    return days


# ----------------------------------------------------------------------------
# Demo / correctness check
# ----------------------------------------------------------------------------
if __name__ == "__main__":
    decay_factor = 0.1
    now_ref = datetime(2024, 1, 1)
    k1, k2 = jax.random.split(jax.random.PRNGKey(0))

    # --- Case 1: ragged length (pads only the 120-element lane remainder),
    #     timestamps parsed via the module's host-side glue incl. fallback. ---
    N1 = 5000
    e1 = jax.random.uniform(k1, (N1,), dtype=jnp.float32)
    timestamps = [(now_ref - timedelta(days=i % 365)).isoformat() for i in range(N1)]
    timestamps[7] = "not-a-timestamp"      # exercises the 0.5-fallback path
    timestamps[4321] = "also-bad"
    d1 = jnp.asarray(_timestamps_to_day_deltas(timestamps, now_ref, decay_factor),
                     dtype=jnp.float32)
    w1 = jax.block_until_ready(temporal_weighting(e1, d1, decay_factor))
    ref1 = e1 * jnp.exp(-decay_factor * d1)
    assert w1.shape == e1.shape and w1.dtype == e1.dtype
    assert jnp.allclose(w1, ref1, atol=1e-6, rtol=1e-5)

    # --- Case 2: multiple of 128 (zero-copy wrapper path) with a multi-block
    #     grid whose last block is a masked ragged boundary (1000 rows, 256-row
    #     tiles -> grid of 4, last block 232 valid rows). ---
    N2 = 128 * 1000
    e2 = jax.random.uniform(k2, (N2,), dtype=jnp.float32)
    d2 = (jnp.arange(N2, dtype=jnp.float32) % 365.0)
    w2 = jax.block_until_ready(
        temporal_weighting(e2, d2, decay_factor, max_block_rows=256))
    ref2 = e2 * jnp.exp(-decay_factor * d2)
    assert w2.shape == e2.shape and w2.dtype == e2.dtype
    assert jnp.allclose(w2, ref2, atol=1e-6, rtol=1e-5)

    print("KERNEL_OK")
</pallas_src>

<mosaic_0001>
module attributes {stable_mosaic.version = 11 : i64} {
  func.func @_temporal_weight_kernel(%arg0: i32, %arg1: memref<1xf32, #tpu.memory_space<smem>>, %arg2: memref<40x128xf32, #tpu.memory_space<vmem>>, %arg3: memref<40x128xf32, #tpu.memory_space<vmem>>, %arg4: memref<40x128xf32, #tpu.memory_space<vmem>>) attributes {dimension_semantics = [#tpu.dimension_semantics<parallel>], iteration_bounds = array<i64: 1>, scalar_prefetch = 1 : i64, scratch_operands = 0 : i64, tpu.core_type = #tpu.core_type<tc>, window_params = [{transform_indices = @transform_0, window_bounds = array<i64: 40, 128>}, {transform_indices = @transform_1, window_bounds = array<i64: 40, 128>}, {transform_indices = @transform_2, window_bounds = array<i64: 40, 128>}]} {
    %c0 = arith.constant 0 : index
    %0 = memref.load %arg1[%c0] : memref<1xf32, #tpu.memory_space<smem>>
    %c0_0 = arith.constant 0 : index
    %c0_1 = arith.constant 0 : index
    %1 = vector.load %arg3[%c0_0, %c0_1] : memref<40x128xf32, #tpu.memory_space<vmem>>, vector<40x128xf32>
    %c0_2 = arith.constant 0 : index
    %c0_3 = arith.constant 0 : index
    %2 = vector.load %arg2[%c0_2, %c0_3] : memref<40x128xf32, #tpu.memory_space<vmem>>, vector<40x128xf32>
    %3 = vector.broadcast %0 : f32 to vector<40x128xf32>
    %4 = arith.mulf %3, %1 : vector<40x128xf32>
    %5 = math.exp %4 : vector<40x128xf32>
    %6 = arith.mulf %2, %5 : vector<40x128xf32>
    %c0_4 = arith.constant 0 : index
    %c0_5 = arith.constant 0 : index
    %7 = vector.load %arg4[%c0_4, %c0_5] : memref<40x128xf32, #tpu.memory_space<vmem>>, vector<40x128xf32>
    tpu.vector_store %arg4[%c0_4, %c0_5], %6 {strides = array<i32>} : memref<40x128xf32, #tpu.memory_space<vmem>>, vector<40x128xf32>,
    return
  }
  func.func @transform_0(%arg0: i32, %arg1: memref<1xf32, #tpu.memory_space<smem>>) -> (i32, i32) {
    %c0_i32 = arith.constant 0 : i32
    %c0_i32_0 = arith.constant 0 : i32
    return %arg0, %c0_i32 : i32, i32
  }
  func.func @transform_1(%arg0: i32, %arg1: memref<1xf32, #tpu.memory_space<smem>>) -> (i32, i32) {
    %c0_i32 = arith.constant 0 : i32
    %c0_i32_0 = arith.constant 0 : i32
    return %arg0, %c0_i32 : i32, i32
  }
  func.func @transform_2(%arg0: i32, %arg1: memref<1xf32, #tpu.memory_space<smem>>) -> (i32, i32) {
    %c0_i32 = arith.constant 0 : i32
    %c0_i32_0 = arith.constant 0 : i32
    return %arg0, %c0_i32 : i32, i32
  }
}

</mosaic_0001>

<llo_original>
// kernel: tpu_custom_call.1
$region0: #{tpu_custom_call.1}
  #allocation0 [shape = 'u32[]', space=smem, size = 0x4, offset = 0x4, fixed_abs, tag = 'smem constant byte address 0x4 - core index']
  #allocation1 [shape = 'u32[144,128]{1,0:T(1,128)}', space=vmem, size = 0x12000, scoped, tag = 'internal scratch']
  #allocation2 [shape = 's32[1]{0}', space=sflag, size = 0x4, scoped, tag = 'scoped memory for tpu_custom_call.1']
  #allocation3 [shape = 'f32[1]{0:T(128)S(6)}', space=smem, size = 0x200, scoped, tag = 'prefetched SMEM operand 0']
  %s0 = inlined_call_operand.<no memory space> [shape: f32[1], index: 0, kind: input, shape index: {}]
  %s1 = inlined_call_operand.hbm [shape: f32[40,128], index: 1, kind: input, shape index: {}]
  %s2 = inlined_call_operand.hbm [shape: f32[40,128], index: 2, kind: input, shape index: {}]
  %s3 = inlined_call_operand.hbm [shape: f32[40,128], index: 3, kind: output, shape index: {}]
  %s4 = sld [smem:[#allocation0]]
  $region26: #{tpu_custom_call.1} parent=0
    _
  %s6 = ssub.s32 1, %s4
  %s7 = scalar_select 0, %s6, %s4
  %8 = sst [smem:[#allocation3]] %s0
  $region1: #{tpu_custom_call.1} parent=0
    #allocation4 [shape = 'u8[20480]{0}', space=vmem, size = 0x5000, scoped, tag = 'input window, operand 1, single buffered']
    #allocation5 [shape = 's32[1]{0}', space=sflag, size = 0x4, scoped, tag = 'scoped memory for tpu_custom_call.1']
    #allocation6 [shape = 's32[1]{0}', space=sflag, size = 0x4, scoped, tag = 'scoped memory for tpu_custom_call.1']
    #allocation7 [shape = 'u8[20480]{0}', space=vmem, size = 0x5000, scoped, tag = 'input window, operand 2, single buffered']
    #allocation8 [shape = 's32[1]{0}', space=sflag, size = 0x4, scoped, tag = 'scoped memory for tpu_custom_call.1']
    #allocation9 [shape = 'u8[20480]{0}', space=vmem, size = 0x5000, scoped, tag = 'output window, operand 0, single buffered']
    %9 = vsyncpa [#allocation5], 0
    %10 = vsyncpa [#allocation8], 0
    %11 = vsyncpa [#allocation6], 0
    // Predicated region
    $region2: #{tpu_custom_call.1} parent=1 // pred_check
      _
    $region3: #{tpu_custom_call.1} parent=1 // pred_check_branch
      %13 = sbr.rel (0) target = $region5
    $region4: #{tpu_custom_call.1} parent=1 // pred_region
      %s15 = ssub.s32 640, 640
      %16 = vsyncadd [#allocation5], %s15
      %s17 = sshll.u32 [#allocation4], 4
      %s18 = int_to_ptr.vmem [resolvable:$true] %s17
      %23 = dma.hbm_to_vmem [thread:$0]  %s1, 640, %s18, [#allocation5], 128, 128, 8
    $region5: #{tpu_custom_call.1} parent=1 // pred_fallthru
      _
    // Predicated region
    $region6: #{tpu_custom_call.1} parent=1 // pred_check
      _
    $region7: #{tpu_custom_call.1} parent=1 // pred_check_branch
      %25 = sbr.rel (0) target = $region9
    $region8: #{tpu_custom_call.1} parent=1 // pred_region
      %s27 = ssub.s32 640, 640
      %28 = vsyncadd [#allocation8], %s27
      %s29 = sshll.u32 [#allocation7], 4
      %s30 = int_to_ptr.vmem [resolvable:$true] %s29
      %35 = dma.hbm_to_vmem [thread:$0]  %s2, 640, %s30, [#allocation8], 128, 128, 8
    $region9: #{tpu_custom_call.1} parent=1 // pred_fallthru
      _
    // Predicated region
    $region10: #{tpu_custom_call.1} parent=1 // pred_check
      _
    $region11: #{tpu_custom_call.1} parent=1 // pred_check_branch
      %37 = sbr.rel (0) target = $region13
    $region12: #{tpu_custom_call.1} parent=1 // pred_region
      %38 = dma.done [#allocation5], 640
    $region13: #{tpu_custom_call.1} parent=1 // pred_fallthru
      _
    // Predicated region
    $region14: #{tpu_custom_call.1} parent=1 // pred_check
      _
    $region15: #{tpu_custom_call.1} parent=1 // pred_check_branch
      %40 = sbr.rel (0) target = $region17
    $region16: #{tpu_custom_call.1} parent=1 // pred_region
      %41 = dma.done [#allocation8], 640
    $region17: #{tpu_custom_call.1} parent=1 // pred_fallthru
      _
    %s42 = sld [smem:[#allocation3]]
    %v43 = vld [vmem:[#allocation7] sm:$0xff]
    %v44 = vld [vmem:[#allocation7 + $0x8] sm:$0xff]
    %v45 = vld [vmem:[#allocation7 + $0x10] sm:$0xff]
    %v46 = vld [vmem:[#allocation7 + $0x18] sm:$0xff]
    %v47 = vld [vmem:[#allocation7 + $0x20] sm:$0xff]
    %v48 = vld [vmem:[#allocation4] sm:$0xff]
    %v49 = vld [vmem:[#allocation4 + $0x8] sm:$0xff]
    %v50 = vld [vmem:[#allocation4 + $0x10] sm:$0xff]
    %v51 = vld [vmem:[#allocation4 + $0x18] sm:$0xff]
    %v52 = vld [vmem:[#allocation4 + $0x20] sm:$0xff]
    %v53 = vstv %s42
    %v54 = vmul.f32 %v53, %v43
    %v55 = vmul.f32 %v53, %v44
    %v56 = vmul.f32 %v53, %v45
    %v57 = vmul.f32 %v53, %v46
    %v58 = vmul.f32 %v53, %v47
    %v59 = vmul.f32 %v54, 1.442695
    %v60 = vpow.pop %v59
    %v61 = vmul.f32 %v55, 1.442695
    %v62 = vpow.pop %v61
    %v63 = vmul.f32 %v56, 1.442695
    %v64 = vpow.pop %v63
    %v65 = vmul.f32 %v57, 1.442695
    %v66 = vpow.pop %v65
    %v67 = vmul.f32 %v58, 1.442695
    %v68 = vpow.pop %v67
    %v69 = vmul.f32 %v48, %v60
    %v70 = vmul.f32 %v49, %v62
    %v71 = vmul.f32 %v50, %v64
    %v72 = vmul.f32 %v51, %v66
    %v73 = vmul.f32 %v52, %v68
    %74 = vst [vmem:[#allocation9] sm:$0xff] %v69
    %75 = vst [vmem:[#allocation9 + $0x8] sm:$0xff] %v70
    %76 = vst [vmem:[#allocation9 + $0x10] sm:$0xff] %v71
    %77 = vst [vmem:[#allocation9 + $0x18] sm:$0xff] %v72
    %78 = vst [vmem:[#allocation9 + $0x20] sm:$0xff] %v73
    // Predicated region
    $region18: #{tpu_custom_call.1} parent=1 // pred_check
      _
    $region19: #{tpu_custom_call.1} parent=1 // pred_check_branch
      %80 = sbr.rel (0) target = $region21
    $region20: #{tpu_custom_call.1} parent=1 // pred_region
      %s82 = ssub.s32 640, 640
      %83 = vsyncadd [#allocation6], %s82
      %s84 = sshll.u32 [#allocation9], 4
      %s85 = int_to_ptr.vmem [resolvable:$true] %s84
      %90 = dma.vmem_to_hbm [thread:$0]  %s85, 640, %s3, [#allocation6], 128, 128, 8
    $region21: #{tpu_custom_call.1} parent=1 // pred_fallthru
      _
    // Predicated region
    $region22: #{tpu_custom_call.1} parent=1 // pred_check
      _
    $region23: #{tpu_custom_call.1} parent=1 // pred_check_branch
      %92 = sbr.rel (0) target = $region25
    $region24: #{tpu_custom_call.1} parent=1 // pred_region
      %93 = dma.done [#allocation6], 640
    $region25: #{tpu_custom_call.1} parent=1 // pred_fallthru
      _
    %94 = vsyncpa [#allocation5], 1
    %95 = vsyncpa [#allocation8], 1
    %96 = vsyncpa [#allocation6], 1

</llo_original>
